<compile_context>
chip_gen: v7x
topology: tpu7x:2x2x1
jax: 0.10.0
libtpu: 0.0.40
codegen_flags: <defaults>
</compile_context>

<pallas_src>
import jax
import jax.numpy as jnp
from jax.experimental import pallas as pl
from jax.experimental.pallas import tpu as pltpu

_LANE_WIDTH = 512                          # 4 * 128 lanes: wide vst, fewer DMA descriptors
_VMEM_TILE_BUDGET_BYTES = 6 * 1024 * 1024  # ~4 live buffers (2 in + 2 out, double-buffered)
_VMEM_LIMIT_BYTES = 16 * 1024 * 1024       # safe on v5e (16 MiB scoped) and v7x (64 MiB phys)
_SMALL_FAST_PATH_BYTES = 1 * 1024 * 1024   # below this, launch/pipeline overhead dominates


def _identity_kernel(x_ref, o_ref):
    # Pure pass-through of one lane-dense VMEM tile.  NOTE: this is still a
    # full HBM read + HBM write per element (2N bytes total); aliasing the
    # output onto the input only saves the output allocation, not the traffic.
    o_ref[...] = x_ref[...]


def _tpu_tileable(dtype) -> bool:
    d = jnp.dtype(dtype)
    if d == jnp.bool_ or jnp.issubdtype(d, jnp.complexfloating):
        return False
    return d.itemsize in (1, 2, 4)


def _sublane_multiple(dtype) -> int:
    # f32/i32 -> 8 sublanes, bf16/f16 -> 16, int8/u8/fp8 -> 32 (sublane packing).
    # Caller guarantees itemsize in {1, 2, 4} via _tpu_tileable.
    return 32 // jnp.dtype(dtype).itemsize


def identity_pallas(x: jax.Array, *, force_kernel: bool = False) -> jax.Array:
    """Identity over an arbitrary-shaped array.

    Fast path: the module's forward() is empty, so no transformation is ever
    required — small arrays (< 1 MiB) and non-TPU-native dtypes are returned
    as-is with zero HBM traffic.  Larger arrays (or force_kernel=True) run a
    lane-dense, HBM-bandwidth-bound Pallas copy whose real roofline is
    2 * nbytes / HBM_BW on every generation; aliasing does not change that.
    """
    orig_shape = x.shape
    orig_dtype = x.dtype
    n = x.size

    # --- short-circuits: the optimal implementation of an empty forward -----
    if n == 0 or not _tpu_tileable(orig_dtype):
        return x
    if not force_kernel and n * jnp.dtype(orig_dtype).itemsize < _SMALL_FAST_PATH_BYTES:
        return x

    # --- lane-dense slab: (rows, 512), at most one fused pad ----------------
    sub = _sublane_multiple(orig_dtype)
    grain = _LANE_WIDTH * sub                       # row-alignment granularity (elements)
    n_pad = ((n + grain - 1) // grain) * grain
    flat = x.reshape(-1)
    if n_pad != n:
        # Single pad straight to the final slab size.  A pad is a full-array
        # XLA copy in HBM, so it is only paid when n is not already aligned.
        flat = jnp.pad(flat, (0, n_pad - n))
    rows = n_pad // _LANE_WIDTH                     # multiple of `sub` by construction
    x2d = flat.reshape(rows, _LANE_WIDTH)

    # Tile rows sized against a conservative VMEM budget (4 live buffers).
    # ~1.5 MiB tiles are already past the ~85%-of-HBM-roofline knee on all
    # generations, so there is no value in spending v7x's smaller VMEM.
    bytes_per_row = _LANE_WIDTH * jnp.dtype(orig_dtype).itemsize
    budget_rows = max(sub, (_VMEM_TILE_BUDGET_BYTES // (4 * bytes_per_row)) // sub * sub)
    tile_rows = min(rows, budget_rows)

    # pl.cdiv grid: the (possibly partial) tail block is masked by Pallas, so
    # no second wrapper-side jnp.pad / extra HBM copy is needed.
    grid = (pl.cdiv(rows, tile_rows),)

    y2d = pl.pallas_call(
        _identity_kernel,
        out_shape=jax.ShapeDtypeStruct((rows, _LANE_WIDTH), orig_dtype),
        grid_spec=pltpu.PrefetchScalarGridSpec(
            num_scalar_prefetch=0,
            grid=grid,
            in_specs=[pl.BlockSpec((tile_rows, _LANE_WIDTH), lambda i: (i, 0))],
            out_specs=pl.BlockSpec((tile_rows, _LANE_WIDTH), lambda i: (i, 0)),
        ),
        # Saves the output HBM allocation (the slab is a consumable temporary);
        # it does NOT remove the 2N bytes of read+write DMA traffic.
        input_output_aliases={0: 0},
        compiler_params=pltpu.CompilerParams(
            dimension_semantics=("parallel",),
            vmem_limit_bytes=_VMEM_LIMIT_BYTES,
        ),
        # TODO(synk): on v7x, pltpu.CORE_PARALLEL (or pl.core_map over a
        # tensorcore mesh) is needed to actually split this copy across both
        # TensorCores; plain "parallel" is kept here for cross-gen portability.
    )(x2d)

    return y2d.reshape(-1)[:n].reshape(orig_shape)


class GetModelVoice:
    """JAX/Pallas mirror of the (empty) PyTorch getModelVoice module."""

    def __init__(self):
        # PyTorch __init__ is `pass` (no parameters, no super().__init__).
        # TODO(synk): no layers/weights defined in the reference module.
        pass

    def initialize_weights(self):
        # Reference implementation is `pass`.
        pass

    def forward(self):
        # Reference forward takes no inputs, performs no compute, returns None.
        # TODO(synk): empty forward — nothing to translate into a hot path.
        return None

    def __call__(self):
        return self.forward()


if __name__ == "__main__":
    key = jax.random.PRNGKey(0)

    # Faithful module call: forward() takes no inputs and returns None.
    model = GetModelVoice()
    model.initialize_weights()
    assert model() is None

    # Small activation-shaped input (N, C, H, W) = (2, 4, 16, 16).
    x_small = jax.random.normal(key, (2, 4, 16, 16), dtype=jnp.float32)

    # 1) Fast path: small array -> returned as-is, no pallas_call launched.
    y_fast = identity_pallas(x_small)
    jax.block_until_ready(y_fast)
    assert y_fast.shape == x_small.shape and y_fast.dtype == x_small.dtype
    assert jnp.array_equal(y_fast, x_small)

    # 2) Kernel path forced on the small input (single (8, 512) tile).
    forced = jax.jit(lambda a: identity_pallas(a, force_kernel=True))
    y_forced = forced(x_small)
    jax.block_until_ready(y_forced)
    assert y_forced.shape == x_small.shape and y_forced.dtype == x_small.dtype
    assert jnp.array_equal(y_forced, x_small)

    # 3) Kernel path taken naturally (2 MiB > fast-path threshold); exercises
    #    the multi-tile grid with a masked tail block and zero wrapper pads.
    x_med = jax.random.normal(jax.random.PRNGKey(0), (8, 4, 128, 128), dtype=jnp.float32)
    y_med = jax.jit(identity_pallas)(x_med)
    jax.block_until_ready(y_med)
    assert y_med.shape == x_med.shape and y_med.dtype == x_med.dtype
    assert jnp.array_equal(y_med, x_med)

    print("KERNEL_OK")
</pallas_src>

<mosaic_0001>
module attributes {stable_mosaic.version = 11 : i64} {
  func.func @_identity_kernel(%arg0: i32, %arg1: memref<8x512xf32, #tpu.memory_space<vmem>>, %arg2: memref<8x512xf32, #tpu.memory_space<vmem>>) attributes {dimension_semantics = [#tpu.dimension_semantics<parallel>], iteration_bounds = array<i64: 1>, scalar_prefetch = 0 : i64, scratch_operands = 0 : i64, tpu.core_type = #tpu.core_type<tc>, window_params = [{transform_indices = @transform_0, window_bounds = array<i64: 8, 512>}, {transform_indices = @transform_1, window_bounds = array<i64: 8, 512>}]} {
    %c0 = arith.constant 0 : index
    %c0_0 = arith.constant 0 : index
    %0 = vector.load %arg1[%c0, %c0_0] : memref<8x512xf32, #tpu.memory_space<vmem>>, vector<8x512xf32>
    %c0_1 = arith.constant 0 : index
    %c0_2 = arith.constant 0 : index
    %1 = vector.load %arg2[%c0_1, %c0_2] : memref<8x512xf32, #tpu.memory_space<vmem>>, vector<8x512xf32>
    tpu.vector_store %arg2[%c0_1, %c0_2], %0 {strides = array<i32>} : memref<8x512xf32, #tpu.memory_space<vmem>>, vector<8x512xf32>,
    return
  }
  func.func @transform_0(%arg0: i32) -> (i32, i32) {
    %c0_i32 = arith.constant 0 : i32
    %c0_i32_0 = arith.constant 0 : i32
    return %arg0, %c0_i32 : i32, i32
  }
  func.func @transform_1(%arg0: i32) -> (i32, i32) {
    %c0_i32 = arith.constant 0 : i32
    %c0_i32_0 = arith.constant 0 : i32
    return %arg0, %c0_i32 : i32, i32
  }
}

</mosaic_0001>

<llo_original>
// kernel: _lambda_.1
$region0: #{_lambda_.1}
  #allocation0 [shape = 'u32[]', space=smem, size = 0x4, offset = 0x4, fixed_abs, tag = 'smem constant byte address 0x4 - core index']
  #allocation1 [shape = 'u32[144,128]{1,0:T(1,128)}', space=vmem, size = 0x12000, scoped, tag = 'internal scratch']
  %s0 = inlined_call_operand.vmem [shape: f32[8,512], index: 0, kind: input, shape index: {}, may-alias: {0,1}]
  %s1 = inlined_call_operand.vmem [shape: f32[8,512], index: 1, kind: output, shape index: {}, may-alias: {0,1}]
  %s2 = sld [smem:[#allocation0]]
  $region14: #{_lambda_.1} parent=0
    _
  %s4 = ssub.s32 1, %s2
  %s5 = scalar_select 0, %s4, %s2
  // Predicated region
  $region2: #{_lambda_.1} parent=0 // pred_check
    _
  $region3: #{_lambda_.1} parent=0 // pred_check_branch
    %7 = sbr.rel (0) target = $region5
  $region4: #{_lambda_.1} parent=0 // pred_region
    _
  $region5: #{_lambda_.1} parent=0 // pred_fallthru
    _
  %v8 = vld [vmem:[%s0] sm:$0xff]
  %v9 = vld [vmem:[%s0 + $0x8] sm:$0xff]
  %v10 = vld [vmem:[%s0 + $0x10] sm:$0xff]
  %v11 = vld [vmem:[%s0 + $0x18] sm:$0xff]
  %12 = vst [vmem:[%s1] sm:$0xff] %v8
  %13 = vst [vmem:[%s1 + $0x8] sm:$0xff] %v9
  %14 = vst [vmem:[%s1 + $0x10] sm:$0xff] %v10
  %15 = vst [vmem:[%s1 + $0x18] sm:$0xff] %v11
  // Predicated region
  $region6: #{_lambda_.1} parent=0 // pred_check
    _
  $region7: #{_lambda_.1} parent=0 // pred_check_branch
    %17 = sbr.rel (0) target = $region9
  $region8: #{_lambda_.1} parent=0 // pred_region
    _
  $region9: #{_lambda_.1} parent=0 // pred_fallthru
    _
  // Predicated region
  $region10: #{_lambda_.1} parent=0 // pred_check
    _
  $region11: #{_lambda_.1} parent=0 // pred_check_branch
    %19 = sbr.rel (0) target = $region13
  $region12: #{_lambda_.1} parent=0 // pred_region
    _
  $region13: #{_lambda_.1} parent=0 // pred_fallthru
    _

</llo_original>
